<compile_context>
chip_gen: v6e
topology: v6e:2x2x1
jax: 0.10.0
libtpu: 0.0.40
codegen_flags: <defaults>
</compile_context>

<pallas_src>
import functools
import math

import jax
import jax.numpy as jnp
from jax import lax
from jax.experimental import pallas as pl
from jax.experimental.pallas import tpu as pltpu


_LCG_A = 0x2C9277B5  # 747796405: 32-bit LCG multiplier (== 1 mod 4)


def _mix32(x):
    """lowbias32 finalizer: bijective avalanche mix of uint32 values."""
    x = x ^ (x >> jnp.uint32(16))
    x = x * jnp.uint32(0x7FEB352D)
    x = x ^ (x >> jnp.uint32(15))
    x = x * jnp.uint32(0x846CA68B)
    x = x ^ (x >> jnp.uint32(16))
    return x


def _bits_to_unit_float(bits):
    """uint32 bits -> uniform f32 in [0, 1) via the mantissa trick."""
    mant = (bits >> jnp.uint32(9)) | jnp.uint32(0x3F800000)
    return lax.bitcast_convert_type(mant, jnp.float32) - 1.0


def _poisson_kernel(sc_ref, x_ref, o_ref, *,
                    inv_gain, out_scale, clip_positive,
                    n_groups, group_size, chunk_rows, n_chunks, ncols,
                    block_rows):
    seed = sc_ref[0]                                   # int32 scalar (SMEM)
    valid_rows = sc_ref[1]                             # int32 scalar (SMEM)
    tile_row0 = pl.program_id(0) * block_rows          # global row of this tile

    # Hoisted iotas (reused by every chunk; JAX does not CSE broadcasts).
    row_iota = lax.broadcasted_iota(jnp.int32, (chunk_rows, ncols), 0)
    col_iota = lax.broadcasted_iota(jnp.int32, (chunk_rows, ncols), 1)
    lcg_a = jnp.uint32(_LCG_A)

    def chunk_body(c, carry):
        r0 = pl.multiple_of(c * chunk_rows, chunk_rows)

        # Skip chunks that are entirely padding rows (no wasted sampling).
        @pl.when(tile_row0 + r0 < valid_rows)
        def _():
            x = x_ref[pl.ds(r0, chunk_rows), :].astype(jnp.float32)
            lam = x * inv_gain
            if clip_positive:
                lam = jnp.maximum(lam, 0.0)
            elam = jnp.exp(-lam)                        # one transcendental / element

            # Per-element, per-seed unique base hash (global element index).
            # TODO(synk): gidx is int32; RNG streams repeat for >= 2^31 elements.
            gidx = (tile_row0 + r0 + row_iota) * ncols + col_iota
            h0 = _mix32(lax.bitcast_convert_type(gidx ^ seed, jnp.uint32))
            lcg_c = h0 | jnp.uint32(1)                  # odd per-element increment

            # Knuth product-form sampler:
            #   count = #{ t : u_1 * ... * u_t > exp(-lam) }  ~  Poisson(lam)
            # p is monotone decreasing, so stopping once every lane satisfies
            # p <= elam is exact (no further increments can occur).
            def cond(carry):
                g, s, p, count = carry
                still_going = jnp.max(p - elam) > 0.0   # cross-lane reduce (XLU)
                return jnp.logical_and(g < n_groups, still_going)

            def body(carry):
                g, s, p, count = carry
                for _ in range(group_size):             # static unroll, VPU only
                    s = s * lcg_a + lcg_c               # 2-op LCG state update
                    u = _bits_to_unit_float(s)
                    p = p * u
                    count = count + jnp.where(p > elam, 1.0, 0.0)
                return g + 1, s, p, count

            init = (jnp.int32(0), h0, jnp.ones_like(elam), jnp.zeros_like(elam))
            _, _, _, count = lax.while_loop(cond, body, init)

            # lam <= 0 (incl. clip_positive=False negatives) yields count == 0.
            o_ref[pl.ds(r0, chunk_rows), :] = (count * out_scale).astype(o_ref.dtype)

        return carry

    lax.fori_loop(0, n_chunks, chunk_body, 0, unroll=2)


def _round_up(a, b):
    return ((a + b - 1) // b) * b


def poisson_noise(x, key, gain=1.0, normalize=True, clip_positive=False,
                  max_iters=None):
    """JAX wrapper mirroring PoissonNoise.forward(x, gain=...)."""
    orig_shape = x.shape
    orig_dtype = x.dtype

    flat = x.reshape(-1).astype(jnp.float32)
    n = flat.shape[0]

    group_size = 8
    if max_iters is None:
        # Data-aware iteration budget: lam_max + 8*sqrt(lam_max) + 8 keeps the
        # truncation probability astronomically small for realistic inputs.
        try:
            lam_max = max(float(jnp.max(flat)), 0.0) / float(gain)
            max_iters = int(math.ceil(lam_max + 8.0 * math.sqrt(lam_max) + 8.0))
        except jax.errors.ConcretizationTypeError:
            max_iters = 64          # traced input: fall back to a fixed budget
    max_iters = min(max(int(max_iters), group_size), 1024)
    max_iters = _round_up(max_iters, group_size)
    n_groups = max_iters // group_size

    ncols = 128                      # lane-dense last dim
    chunk_rows = 32                  # 32x128 f32 = 4 vregs per carried array
    chunk_align = 2 * chunk_rows     # even n_chunks for fori_loop unroll=2

    nrows_data = int(pl.cdiv(n, ncols))
    # >= 4 "parallel" grid steps keeps both v7x TensorCores busy; 2048x128 f32
    # (1 MiB) tiles stay far under the VMEM budget on every generation.
    block_rows = min(2048,
                     max(chunk_align,
                         _round_up(int(pl.cdiv(nrows_data, 4)), chunk_align)))
    nrows = _round_up(max(nrows_data, 1), block_rows)
    n_chunks = block_rows // chunk_rows
    grid = (nrows // block_rows,)

    total = nrows * ncols
    if total == n:
        padded = flat.reshape(nrows, ncols)
    else:
        padded = jnp.pad(flat, (0, total - n)).reshape(nrows, ncols)

    seed = jax.random.randint(key, (), 0, 2 ** 31 - 1, dtype=jnp.int32)
    scalars = jnp.stack([seed, jnp.int32(nrows_data)])   # [seed, valid_rows]

    kernel = functools.partial(
        _poisson_kernel,
        inv_gain=float(1.0 / gain),
        out_scale=float(gain) if normalize else 1.0,
        clip_positive=bool(clip_positive),
        n_groups=int(n_groups),
        group_size=int(group_size),
        chunk_rows=chunk_rows,
        n_chunks=n_chunks,
        ncols=ncols,
        block_rows=block_rows,
    )

    out = pl.pallas_call(
        kernel,
        out_shape=jax.ShapeDtypeStruct((nrows, ncols), jnp.float32),
        grid_spec=pltpu.PrefetchScalarGridSpec(
            num_scalar_prefetch=1,               # [seed, valid_rows] -> SMEM
            grid=grid,
            in_specs=[pl.BlockSpec((block_rows, ncols), lambda i, sc: (i, 0))],
            out_specs=pl.BlockSpec((block_rows, ncols), lambda i, sc: (i, 0)),
        ),
        compiler_params=pltpu.CompilerParams(
            dimension_semantics=("parallel",),   # shard row-tiles across TCs
        ),
    )(scalars, padded)

    return out.reshape(-1)[:n].reshape(orig_shape).astype(orig_dtype)


if __name__ == "__main__":
    key = jax.random.PRNGKey(0)
    kx, kn = jax.random.split(key)

    # Module "parameters" (from __init__ defaults / chosen values).
    gain = 0.5
    normalize = True
    clip_positive = False

    x = jax.random.uniform(kx, (2, 4, 16, 16), dtype=jnp.float32)  # NCHW

    y = poisson_noise(x, kn, gain=gain, normalize=normalize,
                      clip_positive=clip_positive)
    y = jax.block_until_ready(y)

    assert y.shape == x.shape and y.dtype == x.dtype

    # Normalized Poisson samples are non-negative integer multiples of gain.
    counts = y / gain
    assert bool(jnp.all(counts >= 0.0))
    assert bool(jnp.all(jnp.abs(counts - jnp.round(counts)) < 1e-4))

    # E[y] = x, so the sample mean should be close to mean(x).
    assert abs(float(jnp.mean(y)) - float(jnp.mean(x))) < 0.1

    print("KERNEL_OK")
</pallas_src>

<mosaic_0001>
module attributes {stable_mosaic.version = 11 : i64} {
  func.func @_poisson_kernel(%arg0: i32, %arg1: memref<2xi32, #tpu.memory_space<smem>>, %arg2: memref<64x128xf32, #tpu.memory_space<vmem>>, %arg3: memref<64x128xf32, #tpu.memory_space<vmem>>) attributes {dimension_semantics = [#tpu.dimension_semantics<parallel>], iteration_bounds = array<i64: 1>, scalar_prefetch = 1 : i64, scratch_operands = 0 : i64, tpu.core_type = #tpu.core_type<tc>, window_params = [{transform_indices = @transform_0, window_bounds = array<i64: 64, 128>}, {transform_indices = @transform_1, window_bounds = array<i64: 64, 128>}]} {
    %c0 = arith.constant 0 : index
    %0 = memref.load %arg1[%c0] : memref<2xi32, #tpu.memory_space<smem>>
    %c1 = arith.constant 1 : index
    %1 = memref.load %arg1[%c1] : memref<2xi32, #tpu.memory_space<smem>>
    %c64_i32 = arith.constant 64 : i32
    %2 = arith.muli %arg0, %c64_i32 : i32
    %3 = tpu.iota {dimensions = array<i32: 0>} : vector<32x128xi32>
    %4 = tpu.iota {dimensions = array<i32: 1>} : vector<32x128xi32>
    %c747796405_i32 = arith.constant 747796405 : i32
    %c0_i32 = arith.constant 0 : i32
    %c32_i32 = arith.constant 32 : i32
    %5 = arith.muli %c0_i32, %c32_i32 : i32
    %6 = tpu.assume_multiple %5, 32 : i32
    %7 = arith.addi %2, %6 : i32
    %8 = arith.cmpi slt, %7, %1 : i32
    %9 = arith.extui %8 : i1 to i32
    %c0_i32_0 = arith.constant 0 : i32
    %10 = arith.cmpi ne, %9, %c0_i32_0 : i32
    scf.if %10 {
      %17 = arith.index_cast %6 : i32 to index
      %c0_3 = arith.constant 0 : index
      %18 = vector.load %arg2[%17, %c0_3] : memref<64x128xf32, #tpu.memory_space<vmem>>, vector<32x128xf32>
      %cst = arith.constant 2.000000e+00 : f32
      %19 = vector.broadcast %cst : f32 to vector<32x128xf32>
      %20 = arith.mulf %18, %19 : vector<32x128xf32>
      %cst_4 = arith.constant 0.000000e+00 : f32
      %21 = vector.broadcast %cst_4 : f32 to vector<32x128xf32>
      %22 = arith.subf %21, %20 : vector<32x128xf32>
      %23 = math.exp %22 : vector<32x128xf32>
      %24 = arith.addi %2, %6 : i32
      %25 = vector.broadcast %24 : i32 to vector<32x128xi32>
      %26 = arith.addi %25, %3 : vector<32x128xi32>
      %c128_i32 = arith.constant 128 : i32
      %27 = vector.broadcast %c128_i32 : i32 to vector<32x128xi32>
      %28 = arith.muli %26, %27 : vector<32x128xi32>
      %29 = arith.addi %28, %4 : vector<32x128xi32>
      %30 = vector.broadcast %0 : i32 to vector<32x128xi32>
      %31 = arith.xori %29, %30 : vector<32x128xi32>
      %32 = tpu.bitcast %31 : vector<32x128xi32> -> vector<32x128xi32>
      %c16_i32 = arith.constant 16 : i32
      %33 = vector.broadcast %c16_i32 : i32 to vector<32x128xi32>
      %34 = arith.shrui %32, %33 : vector<32x128xi32>
      %35 = arith.xori %32, %34 : vector<32x128xi32>
      %c2146121005_i32 = arith.constant 2146121005 : i32
      %36 = vector.broadcast %c2146121005_i32 : i32 to vector<32x128xi32>
      %37 = arith.muli %35, %36 : vector<32x128xi32>
      %c15_i32 = arith.constant 15 : i32
      %38 = vector.broadcast %c15_i32 : i32 to vector<32x128xi32>
      %39 = arith.shrui %37, %38 : vector<32x128xi32>
      %40 = arith.xori %37, %39 : vector<32x128xi32>
      %c-2073254261_i32 = arith.constant -2073254261 : i32
      %41 = vector.broadcast %c-2073254261_i32 : i32 to vector<32x128xi32>
      %42 = arith.muli %40, %41 : vector<32x128xi32>
      %c16_i32_5 = arith.constant 16 : i32
      %43 = vector.broadcast %c16_i32_5 : i32 to vector<32x128xi32>
      %44 = arith.shrui %42, %43 : vector<32x128xi32>
      %45 = arith.xori %42, %44 : vector<32x128xi32>
      %c1_i32_6 = arith.constant 1 : i32
      %46 = vector.broadcast %c1_i32_6 : i32 to vector<32x128xi32>
      %47 = arith.ori %45, %46 : vector<32x128xi32>
      %cst_7 = arith.constant 1.000000e+00 : f32
      %48 = vector.broadcast %cst_7 : f32 to vector<32x128xf32>
      %cst_8 = arith.constant 0.000000e+00 : f32
      %49 = vector.broadcast %cst_8 : f32 to vector<32x128xf32>
      %c0_i32_9 = arith.constant 0 : i32
      %50:4 = scf.while (%arg4 = %c0_i32_9, %arg5 = %45, %arg6 = %48, %arg7 = %49) : (i32, vector<32x128xi32>, vector<32x128xf32>, vector<32x128xf32>) -> (i32, vector<32x128xi32>, vector<32x128xf32>, vector<32x128xf32>) {
        %55 = arith.subf %arg6, %23 : vector<32x128xf32>
        %56 = vector.shape_cast %55 : vector<32x128xf32> to vector<1x32x128xf32>
        %cst_12 = arith.constant dense<0xFF800000> : vector<1xf32>
        %57 = vector.multi_reduction <maximumf>, %56, %cst_12 [1, 2] : vector<1x32x128xf32> to vector<1xf32>
        %58 = vector.shape_cast %57 : vector<1xf32> to vector<1x1x1xf32>
        %59 = vector.extract %58[0, 0, 0] : f32 from vector<1x1x1xf32>
        %cst_13 = arith.constant 0.000000e+00 : f32
        %60 = arith.cmpf ogt, %59, %cst_13 : f32
        %c3_i32 = arith.constant 3 : i32
        %61 = arith.cmpi slt, %arg4, %c3_i32 : i32
        %62 = arith.andi %61, %60 : i1
        scf.condition(%62) %arg4, %arg5, %arg6, %arg7 : i32, vector<32x128xi32>, vector<32x128xf32>, vector<32x128xf32>
      } do {
      ^bb0(%arg4: i32, %arg5: vector<32x128xi32>, %arg6: vector<32x128xf32>, %arg7: vector<32x128xf32>):
        %55 = vector.broadcast %c747796405_i32 : i32 to vector<32x128xi32>
        %56 = arith.muli %arg5, %55 : vector<32x128xi32>
        %57 = arith.addi %56, %47 : vector<32x128xi32>
        %c9_i32 = arith.constant 9 : i32
        %58 = vector.broadcast %c9_i32 : i32 to vector<32x128xi32>
        %59 = arith.shrui %57, %58 : vector<32x128xi32>
        %c1065353216_i32 = arith.constant 1065353216 : i32
        %60 = vector.broadcast %c1065353216_i32 : i32 to vector<32x128xi32>
        %61 = arith.ori %59, %60 : vector<32x128xi32>
        %62 = tpu.bitcast %61 : vector<32x128xi32> -> vector<32x128xf32>
        %cst_12 = arith.constant 1.000000e+00 : f32
        %63 = vector.broadcast %cst_12 : f32 to vector<32x128xf32>
        %64 = arith.subf %62, %63 : vector<32x128xf32>
        %65 = arith.mulf %arg6, %64 : vector<32x128xf32>
        %66 = arith.cmpf ogt, %65, %23 : vector<32x128xf32>
        %cst_13 = arith.constant 1.000000e+00 : f32
        %cst_14 = arith.constant 0.000000e+00 : f32
        %67 = vector.broadcast %cst_13 : f32 to vector<32x128xf32>
        %68 = vector.broadcast %cst_14 : f32 to vector<32x128xf32>
        %69 = arith.select %66, %67, %68 : vector<32x128xi1>, vector<32x128xf32>
        %70 = arith.addf %arg7, %69 : vector<32x128xf32>
        %71 = vector.broadcast %c747796405_i32 : i32 to vector<32x128xi32>
        %72 = arith.muli %57, %71 : vector<32x128xi32>
        %73 = arith.addi %72, %47 : vector<32x128xi32>
        %c9_i32_15 = arith.constant 9 : i32
        %74 = vector.broadcast %c9_i32_15 : i32 to vector<32x128xi32>
        %75 = arith.shrui %73, %74 : vector<32x128xi32>
        %c1065353216_i32_16 = arith.constant 1065353216 : i32
        %76 = vector.broadcast %c1065353216_i32_16 : i32 to vector<32x128xi32>
        %77 = arith.ori %75, %76 : vector<32x128xi32>
        %78 = tpu.bitcast %77 : vector<32x128xi32> -> vector<32x128xf32>
        %cst_17 = arith.constant 1.000000e+00 : f32
        %79 = vector.broadcast %cst_17 : f32 to vector<32x128xf32>
        %80 = arith.subf %78, %79 : vector<32x128xf32>
        %81 = arith.mulf %65, %80 : vector<32x128xf32>
        %82 = arith.cmpf ogt, %81, %23 : vector<32x128xf32>
        %cst_18 = arith.constant 1.000000e+00 : f32
        %cst_19 = arith.constant 0.000000e+00 : f32
        %83 = vector.broadcast %cst_18 : f32 to vector<32x128xf32>
        %84 = vector.broadcast %cst_19 : f32 to vector<32x128xf32>
        %85 = arith.select %82, %83, %84 : vector<32x128xi1>, vector<32x128xf32>
        %86 = arith.addf %70, %85 : vector<32x128xf32>
        %87 = vector.broadcast %c747796405_i32 : i32 to vector<32x128xi32>
        %88 = arith.muli %73, %87 : vector<32x128xi32>
        %89 = arith.addi %88, %47 : vector<32x128xi32>
        %c9_i32_20 = arith.constant 9 : i32
        %90 = vector.broadcast %c9_i32_20 : i32 to vector<32x128xi32>
        %91 = arith.shrui %89, %90 : vector<32x128xi32>
        %c1065353216_i32_21 = arith.constant 1065353216 : i32
        %92 = vector.broadcast %c1065353216_i32_21 : i32 to vector<32x128xi32>
        %93 = arith.ori %91, %92 : vector<32x128xi32>
        %94 = tpu.bitcast %93 : vector<32x128xi32> -> vector<32x128xf32>
        %cst_22 = arith.constant 1.000000e+00 : f32
        %95 = vector.broadcast %cst_22 : f32 to vector<32x128xf32>
        %96 = arith.subf %94, %95 : vector<32x128xf32>
        %97 = arith.mulf %81, %96 : vector<32x128xf32>
        %98 = arith.cmpf ogt, %97, %23 : vector<32x128xf32>
        %cst_23 = arith.constant 1.000000e+00 : f32
        %cst_24 = arith.constant 0.000000e+00 : f32
        %99 = vector.broadcast %cst_23 : f32 to vector<32x128xf32>
        %100 = vector.broadcast %cst_24 : f32 to vector<32x128xf32>
        %101 = arith.select %98, %99, %100 : vector<32x128xi1>, vector<32x128xf32>
        %102 = arith.addf %86, %101 : vector<32x128xf32>
        %103 = vector.broadcast %c747796405_i32 : i32 to vector<32x128xi32>
        %104 = arith.muli %89, %103 : vector<32x128xi32>
        %105 = arith.addi %104, %47 : vector<32x128xi32>
        %c9_i32_25 = arith.constant 9 : i32
        %106 = vector.broadcast %c9_i32_25 : i32 to vector<32x128xi32>
        %107 = arith.shrui %105, %106 : vector<32x128xi32>
        %c1065353216_i32_26 = arith.constant 1065353216 : i32
        %108 = vector.broadcast %c1065353216_i32_26 : i32 to vector<32x128xi32>
        %109 = arith.ori %107, %108 : vector<32x128xi32>
        %110 = tpu.bitcast %109 : vector<32x128xi32> -> vector<32x128xf32>
        %cst_27 = arith.constant 1.000000e+00 : f32
        %111 = vector.broadcast %cst_27 : f32 to vector<32x128xf32>
        %112 = arith.subf %110, %111 : vector<32x128xf32>
        %113 = arith.mulf %97, %112 : vector<32x128xf32>
        %114 = arith.cmpf ogt, %113, %23 : vector<32x128xf32>
        %cst_28 = arith.constant 1.000000e+00 : f32
        %cst_29 = arith.constant 0.000000e+00 : f32
        %115 = vector.broadcast %cst_28 : f32 to vector<32x128xf32>
        %116 = vector.broadcast %cst_29 : f32 to vector<32x128xf32>
        %117 = arith.select %114, %115, %116 : vector<32x128xi1>, vector<32x128xf32>
        %118 = arith.addf %102, %117 : vector<32x128xf32>
        %119 = vector.broadcast %c747796405_i32 : i32 to vector<32x128xi32>
        %120 = arith.muli %105, %119 : vector<32x128xi32>
        %121 = arith.addi %120, %47 : vector<32x128xi32>
        %c9_i32_30 = arith.constant 9 : i32
        %122 = vector.broadcast %c9_i32_30 : i32 to vector<32x128xi32>
        %123 = arith.shrui %121, %122 : vector<32x128xi32>
        %c1065353216_i32_31 = arith.constant 1065353216 : i32
        %124 = vector.broadcast %c1065353216_i32_31 : i32 to vector<32x128xi32>
        %125 = arith.ori %123, %124 : vector<32x128xi32>
        %126 = tpu.bitcast %125 : vector<32x128xi32> -> vector<32x128xf32>
        %cst_32 = arith.constant 1.000000e+00 : f32
        %127 = vector.broadcast %cst_32 : f32 to vector<32x128xf32>
        %128 = arith.subf %126, %127 : vector<32x128xf32>
        %129 = arith.mulf %113, %128 : vector<32x128xf32>
        %130 = arith.cmpf ogt, %129, %23 : vector<32x128xf32>
        %cst_33 = arith.constant 1.000000e+00 : f32
        %cst_34 = arith.constant 0.000000e+00 : f32
        %131 = vector.broadcast %cst_33 : f32 to vector<32x128xf32>
        %132 = vector.broadcast %cst_34 : f32 to vector<32x128xf32>
        %133 = arith.select %130, %131, %132 : vector<32x128xi1>, vector<32x128xf32>
        %134 = arith.addf %118, %133 : vector<32x128xf32>
        %135 = vector.broadcast %c747796405_i32 : i32 to vector<32x128xi32>
        %136 = arith.muli %121, %135 : vector<32x128xi32>
        %137 = arith.addi %136, %47 : vector<32x128xi32>
        %c9_i32_35 = arith.constant 9 : i32
        %138 = vector.broadcast %c9_i32_35 : i32 to vector<32x128xi32>
        %139 = arith.shrui %137, %138 : vector<32x128xi32>
        %c1065353216_i32_36 = arith.constant 1065353216 : i32
        %140 = vector.broadcast %c1065353216_i32_36 : i32 to vector<32x128xi32>
        %141 = arith.ori %139, %140 : vector<32x128xi32>
        %142 = tpu.bitcast %141 : vector<32x128xi32> -> vector<32x128xf32>
        %cst_37 = arith.constant 1.000000e+00 : f32
        %143 = vector.broadcast %cst_37 : f32 to vector<32x128xf32>
        %144 = arith.subf %142, %143 : vector<32x128xf32>
        %145 = arith.mulf %129, %144 : vector<32x128xf32>
        %146 = arith.cmpf ogt, %145, %23 : vector<32x128xf32>
        %cst_38 = arith.constant 1.000000e+00 : f32
        %cst_39 = arith.constant 0.000000e+00 : f32
        %147 = vector.broadcast %cst_38 : f32 to vector<32x128xf32>
        %148 = vector.broadcast %cst_39 : f32 to vector<32x128xf32>
        %149 = arith.select %146, %147, %148 : vector<32x128xi1>, vector<32x128xf32>
        %150 = arith.addf %134, %149 : vector<32x128xf32>
        %151 = vector.broadcast %c747796405_i32 : i32 to vector<32x128xi32>
        %152 = arith.muli %137, %151 : vector<32x128xi32>
        %153 = arith.addi %152, %47 : vector<32x128xi32>
        %c9_i32_40 = arith.constant 9 : i32
        %154 = vector.broadcast %c9_i32_40 : i32 to vector<32x128xi32>
        %155 = arith.shrui %153, %154 : vector<32x128xi32>
        %c1065353216_i32_41 = arith.constant 1065353216 : i32
        %156 = vector.broadcast %c1065353216_i32_41 : i32 to vector<32x128xi32>
        %157 = arith.ori %155, %156 : vector<32x128xi32>
        %158 = tpu.bitcast %157 : vector<32x128xi32> -> vector<32x128xf32>
        %cst_42 = arith.constant 1.000000e+00 : f32
        %159 = vector.broadcast %cst_42 : f32 to vector<32x128xf32>
        %160 = arith.subf %158, %159 : vector<32x128xf32>
        %161 = arith.mulf %145, %160 : vector<32x128xf32>
        %162 = arith.cmpf ogt, %161, %23 : vector<32x128xf32>
        %cst_43 = arith.constant 1.000000e+00 : f32
        %cst_44 = arith.constant 0.000000e+00 : f32
        %163 = vector.broadcast %cst_43 : f32 to vector<32x128xf32>
        %164 = vector.broadcast %cst_44 : f32 to vector<32x128xf32>
        %165 = arith.select %162, %163, %164 : vector<32x128xi1>, vector<32x128xf32>
        %166 = arith.addf %150, %165 : vector<32x128xf32>
        %167 = vector.broadcast %c747796405_i32 : i32 to vector<32x128xi32>
        %168 = arith.muli %153, %167 : vector<32x128xi32>
        %169 = arith.addi %168, %47 : vector<32x128xi32>
        %c9_i32_45 = arith.constant 9 : i32
        %170 = vector.broadcast %c9_i32_45 : i32 to vector<32x128xi32>
        %171 = arith.shrui %169, %170 : vector<32x128xi32>
        %c1065353216_i32_46 = arith.constant 1065353216 : i32
        %172 = vector.broadcast %c1065353216_i32_46 : i32 to vector<32x128xi32>
        %173 = arith.ori %171, %172 : vector<32x128xi32>
        %174 = tpu.bitcast %173 : vector<32x128xi32> -> vector<32x128xf32>
        %cst_47 = arith.constant 1.000000e+00 : f32
        %175 = vector.broadcast %cst_47 : f32 to vector<32x128xf32>
        %176 = arith.subf %174, %175 : vector<32x128xf32>
        %177 = arith.mulf %161, %176 : vector<32x128xf32>
        %178 = arith.cmpf ogt, %177, %23 : vector<32x128xf32>
        %cst_48 = arith.constant 1.000000e+00 : f32
        %cst_49 = arith.constant 0.000000e+00 : f32
        %179 = vector.broadcast %cst_48 : f32 to vector<32x128xf32>
        %180 = vector.broadcast %cst_49 : f32 to vector<32x128xf32>
        %181 = arith.select %178, %179, %180 : vector<32x128xi1>, vector<32x128xf32>
        %182 = arith.addf %166, %181 : vector<32x128xf32>
        %c1_i32_50 = arith.constant 1 : i32
        %183 = arith.addi %arg4, %c1_i32_50 : i32
        scf.yield %183, %169, %177, %182 : i32, vector<32x128xi32>, vector<32x128xf32>, vector<32x128xf32>
      }
      %cst_10 = arith.constant 5.000000e-01 : f32
      %51 = vector.broadcast %cst_10 : f32 to vector<32x128xf32>
      %52 = arith.mulf %50#3, %51 : vector<32x128xf32>
      %53 = arith.index_cast %6 : i32 to index
      %c0_11 = arith.constant 0 : index
      %54 = vector.load %arg3[%53, %c0_11] : memref<64x128xf32, #tpu.memory_space<vmem>>, vector<32x128xf32>
      tpu.vector_store %arg3[%53, %c0_11], %52 {strides = array<i32>} : memref<64x128xf32, #tpu.memory_space<vmem>>, vector<32x128xf32>,
    } else {
    }
    %c1_i32 = arith.constant 1 : i32
    %c32_i32_1 = arith.constant 32 : i32
    %11 = arith.muli %c1_i32, %c32_i32_1 : i32
    %12 = tpu.assume_multiple %11, 32 : i32
    %13 = arith.addi %2, %12 : i32
    %14 = arith.cmpi slt, %13, %1 : i32
    %15 = arith.extui %14 : i1 to i32
    %c0_i32_2 = arith.constant 0 : i32
    %16 = arith.cmpi ne, %15, %c0_i32_2 : i32
    scf.if %16 {
      %17 = arith.index_cast %12 : i32 to index
      %c0_3 = arith.constant 0 : index
      %18 = vector.load %arg2[%17, %c0_3] : memref<64x128xf32, #tpu.memory_space<vmem>>, vector<32x128xf32>
      %cst = arith.constant 2.000000e+00 : f32
      %19 = vector.broadcast %cst : f32 to vector<32x128xf32>
      %20 = arith.mulf %18, %19 : vector<32x128xf32>
      %cst_4 = arith.constant 0.000000e+00 : f32
      %21 = vector.broadcast %cst_4 : f32 to vector<32x128xf32>
      %22 = arith.subf %21, %20 : vector<32x128xf32>
      %23 = math.exp %22 : vector<32x128xf32>
      %24 = arith.addi %2, %12 : i32
      %25 = vector.broadcast %24 : i32 to vector<32x128xi32>
      %26 = arith.addi %25, %3 : vector<32x128xi32>
      %c128_i32 = arith.constant 128 : i32
      %27 = vector.broadcast %c128_i32 : i32 to vector<32x128xi32>
      %28 = arith.muli %26, %27 : vector<32x128xi32>
      %29 = arith.addi %28, %4 : vector<32x128xi32>
      %30 = vector.broadcast %0 : i32 to vector<32x128xi32>
      %31 = arith.xori %29, %30 : vector<32x128xi32>
      %32 = tpu.bitcast %31 : vector<32x128xi32> -> vector<32x128xi32>
      %c16_i32 = arith.constant 16 : i32
      %33 = vector.broadcast %c16_i32 : i32 to vector<32x128xi32>
      %34 = arith.shrui %32, %33 : vector<32x128xi32>
      %35 = arith.xori %32, %34 : vector<32x128xi32>
      %c2146121005_i32 = arith.constant 2146121005 : i32
      %36 = vector.broadcast %c2146121005_i32 : i32 to vector<32x128xi32>
      %37 = arith.muli %35, %36 : vector<32x128xi32>
      %c15_i32 = arith.constant 15 : i32
      %38 = vector.broadcast %c15_i32 : i32 to vector<32x128xi32>
      %39 = arith.shrui %37, %38 : vector<32x128xi32>
      %40 = arith.xori %37, %39 : vector<32x128xi32>
      %c-2073254261_i32 = arith.constant -2073254261 : i32
      %41 = vector.broadcast %c-2073254261_i32 : i32 to vector<32x128xi32>
      %42 = arith.muli %40, %41 : vector<32x128xi32>
      %c16_i32_5 = arith.constant 16 : i32
      %43 = vector.broadcast %c16_i32_5 : i32 to vector<32x128xi32>
      %44 = arith.shrui %42, %43 : vector<32x128xi32>
      %45 = arith.xori %42, %44 : vector<32x128xi32>
      %c1_i32_6 = arith.constant 1 : i32
      %46 = vector.broadcast %c1_i32_6 : i32 to vector<32x128xi32>
      %47 = arith.ori %45, %46 : vector<32x128xi32>
      %cst_7 = arith.constant 1.000000e+00 : f32
      %48 = vector.broadcast %cst_7 : f32 to vector<32x128xf32>
      %cst_8 = arith.constant 0.000000e+00 : f32
      %49 = vector.broadcast %cst_8 : f32 to vector<32x128xf32>
      %c0_i32_9 = arith.constant 0 : i32
      %50:4 = scf.while (%arg4 = %c0_i32_9, %arg5 = %45, %arg6 = %48, %arg7 = %49) : (i32, vector<32x128xi32>, vector<32x128xf32>, vector<32x128xf32>) -> (i32, vector<32x128xi32>, vector<32x128xf32>, vector<32x128xf32>) {
        %55 = arith.subf %arg6, %23 : vector<32x128xf32>
        %56 = vector.shape_cast %55 : vector<32x128xf32> to vector<1x32x128xf32>
        %cst_12 = arith.constant dense<0xFF800000> : vector<1xf32>
        %57 = vector.multi_reduction <maximumf>, %56, %cst_12 [1, 2] : vector<1x32x128xf32> to vector<1xf32>
        %58 = vector.shape_cast %57 : vector<1xf32> to vector<1x1x1xf32>
        %59 = vector.extract %58[0, 0, 0] : f32 from vector<1x1x1xf32>
        %cst_13 = arith.constant 0.000000e+00 : f32
        %60 = arith.cmpf ogt, %59, %cst_13 : f32
        %c3_i32 = arith.constant 3 : i32
        %61 = arith.cmpi slt, %arg4, %c3_i32 : i32
        %62 = arith.andi %61, %60 : i1
        scf.condition(%62) %arg4, %arg5, %arg6, %arg7 : i32, vector<32x128xi32>, vector<32x128xf32>, vector<32x128xf32>
      } do {
      ^bb0(%arg4: i32, %arg5: vector<32x128xi32>, %arg6: vector<32x128xf32>, %arg7: vector<32x128xf32>):
        %55 = vector.broadcast %c747796405_i32 : i32 to vector<32x128xi32>
        %56 = arith.muli %arg5, %55 : vector<32x128xi32>
        %57 = arith.addi %56, %47 : vector<32x128xi32>
        %c9_i32 = arith.constant 9 : i32
        %58 = vector.broadcast %c9_i32 : i32 to vector<32x128xi32>
        %59 = arith.shrui %57, %58 : vector<32x128xi32>
        %c1065353216_i32 = arith.constant 1065353216 : i32
        %60 = vector.broadcast %c1065353216_i32 : i32 to vector<32x128xi32>
        %61 = arith.ori %59, %60 : vector<32x128xi32>
        %62 = tpu.bitcast %61 : vector<32x128xi32> -> vector<32x128xf32>
        %cst_12 = arith.constant 1.000000e+00 : f32
        %63 = vector.broadcast %cst_12 : f32 to vector<32x128xf32>
        %64 = arith.subf %62, %63 : vector<32x128xf32>
        %65 = arith.mulf %arg6, %64 : vector<32x128xf32>
        %66 = arith.cmpf ogt, %65, %23 : vector<32x128xf32>
        %cst_13 = arith.constant 1.000000e+00 : f32
        %cst_14 = arith.constant 0.000000e+00 : f32
        %67 = vector.broadcast %cst_13 : f32 to vector<32x128xf32>
        %68 = vector.broadcast %cst_14 : f32 to vector<32x128xf32>
        %69 = arith.select %66, %67, %68 : vector<32x128xi1>, vector<32x128xf32>
        %70 = arith.addf %arg7, %69 : vector<32x128xf32>
        %71 = vector.broadcast %c747796405_i32 : i32 to vector<32x128xi32>
        %72 = arith.muli %57, %71 : vector<32x128xi32>
        %73 = arith.addi %72, %47 : vector<32x128xi32>
        %c9_i32_15 = arith.constant 9 : i32
        %74 = vector.broadcast %c9_i32_15 : i32 to vector<32x128xi32>
        %75 = arith.shrui %73, %74 : vector<32x128xi32>
        %c1065353216_i32_16 = arith.constant 1065353216 : i32
        %76 = vector.broadcast %c1065353216_i32_16 : i32 to vector<32x128xi32>
        %77 = arith.ori %75, %76 : vector<32x128xi32>
        %78 = tpu.bitcast %77 : vector<32x128xi32> -> vector<32x128xf32>
        %cst_17 = arith.constant 1.000000e+00 : f32
        %79 = vector.broadcast %cst_17 : f32 to vector<32x128xf32>
        %80 = arith.subf %78, %79 : vector<32x128xf32>
        %81 = arith.mulf %65, %80 : vector<32x128xf32>
        %82 = arith.cmpf ogt, %81, %23 : vector<32x128xf32>
        %cst_18 = arith.constant 1.000000e+00 : f32
        %cst_19 = arith.constant 0.000000e+00 : f32
        %83 = vector.broadcast %cst_18 : f32 to vector<32x128xf32>
        %84 = vector.broadcast %cst_19 : f32 to vector<32x128xf32>
        %85 = arith.select %82, %83, %84 : vector<32x128xi1>, vector<32x128xf32>
        %86 = arith.addf %70, %85 : vector<32x128xf32>
        %87 = vector.broadcast %c747796405_i32 : i32 to vector<32x128xi32>
        %88 = arith.muli %73, %87 : vector<32x128xi32>
        %89 = arith.addi %88, %47 : vector<32x128xi32>
        %c9_i32_20 = arith.constant 9 : i32
        %90 = vector.broadcast %c9_i32_20 : i32 to vector<32x128xi32>
        %91 = arith.shrui %89, %90 : vector<32x128xi32>
        %c1065353216_i32_21 = arith.constant 1065353216 : i32
        %92 = vector.broadcast %c1065353216_i32_21 : i32 to vector<32x128xi32>
        %93 = arith.ori %91, %92 : vector<32x128xi32>
        %94 = tpu.bitcast %93 : vector<32x128xi32> -> vector<32x128xf32>
        %cst_22 = arith.constant 1.000000e+00 : f32
        %95 = vector.broadcast %cst_22 : f32 to vector<32x128xf32>
        %96 = arith.subf %94, %95 : vector<32x128xf32>
        %97 = arith.mulf %81, %96 : vector<32x128xf32>
        %98 = arith.cmpf ogt, %97, %23 : vector<32x128xf32>
        %cst_23 = arith.constant 1.000000e+00 : f32
        %cst_24 = arith.constant 0.000000e+00 : f32
        %99 = vector.broadcast %cst_23 : f32 to vector<32x128xf32>
        %100 = vector.broadcast %cst_24 : f32 to vector<32x128xf32>
        %101 = arith.select %98, %99, %100 : vector<32x128xi1>, vector<32x128xf32>
        %102 = arith.addf %86, %101 : vector<32x128xf32>
        %103 = vector.broadcast %c747796405_i32 : i32 to vector<32x128xi32>
        %104 = arith.muli %89, %103 : vector<32x128xi32>
        %105 = arith.addi %104, %47 : vector<32x128xi32>
        %c9_i32_25 = arith.constant 9 : i32
        %106 = vector.broadcast %c9_i32_25 : i32 to vector<32x128xi32>
        %107 = arith.shrui %105, %106 : vector<32x128xi32>
        %c1065353216_i32_26 = arith.constant 1065353216 : i32
        %108 = vector.broadcast %c1065353216_i32_26 : i32 to vector<32x128xi32>
        %109 = arith.ori %107, %108 : vector<32x128xi32>
        %110 = tpu.bitcast %109 : vector<32x128xi32> -> vector<32x128xf32>
        %cst_27 = arith.constant 1.000000e+00 : f32
        %111 = vector.broadcast %cst_27 : f32 to vector<32x128xf32>
        %112 = arith.subf %110, %111 : vector<32x128xf32>
        %113 = arith.mulf %97, %112 : vector<32x128xf32>
        %114 = arith.cmpf ogt, %113, %23 : vector<32x128xf32>
        %cst_28 = arith.constant 1.000000e+00 : f32
        %cst_29 = arith.constant 0.000000e+00 : f32
        %115 = vector.broadcast %cst_28 : f32 to vector<32x128xf32>
        %116 = vector.broadcast %cst_29 : f32 to vector<32x128xf32>
        %117 = arith.select %114, %115, %116 : vector<32x128xi1>, vector<32x128xf32>
        %118 = arith.addf %102, %117 : vector<32x128xf32>
        %119 = vector.broadcast %c747796405_i32 : i32 to vector<32x128xi32>
        %120 = arith.muli %105, %119 : vector<32x128xi32>
        %121 = arith.addi %120, %47 : vector<32x128xi32>
        %c9_i32_30 = arith.constant 9 : i32
        %122 = vector.broadcast %c9_i32_30 : i32 to vector<32x128xi32>
        %123 = arith.shrui %121, %122 : vector<32x128xi32>
        %c1065353216_i32_31 = arith.constant 1065353216 : i32
        %124 = vector.broadcast %c1065353216_i32_31 : i32 to vector<32x128xi32>
        %125 = arith.ori %123, %124 : vector<32x128xi32>
        %126 = tpu.bitcast %125 : vector<32x128xi32> -> vector<32x128xf32>
        %cst_32 = arith.constant 1.000000e+00 : f32
        %127 = vector.broadcast %cst_32 : f32 to vector<32x128xf32>
        %128 = arith.subf %126, %127 : vector<32x128xf32>
        %129 = arith.mulf %113, %128 : vector<32x128xf32>
        %130 = arith.cmpf ogt, %129, %23 : vector<32x128xf32>
        %cst_33 = arith.constant 1.000000e+00 : f32
        %cst_34 = arith.constant 0.000000e+00 : f32
        %131 = vector.broadcast %cst_33 : f32 to vector<32x128xf32>
        %132 = vector.broadcast %cst_34 : f32 to vector<32x128xf32>
        %133 = arith.select %130, %131, %132 : vector<32x128xi1>, vector<32x128xf32>
        %134 = arith.addf %118, %133 : vector<32x128xf32>
        %135 = vector.broadcast %c747796405_i32 : i32 to vector<32x128xi32>
        %136 = arith.muli %121, %135 : vector<32x128xi32>
        %137 = arith.addi %136, %47 : vector<32x128xi32>
        %c9_i32_35 = arith.constant 9 : i32
        %138 = vector.broadcast %c9_i32_35 : i32 to vector<32x128xi32>
        %139 = arith.shrui %137, %138 : vector<32x128xi32>
        %c1065353216_i32_36 = arith.constant 1065353216 : i32
        %140 = vector.broadcast %c1065353216_i32_36 : i32 to vector<32x128xi32>
        %141 = arith.ori %139, %140 : vector<32x128xi32>
        %142 = tpu.bitcast %141 : vector<32x128xi32> -> vector<32x128xf32>
        %cst_37 = arith.constant 1.000000e+00 : f32
        %143 = vector.broadcast %cst_37 : f32 to vector<32x128xf32>
        %144 = arith.subf %142, %143 : vector<32x128xf32>
        %145 = arith.mulf %129, %144 : vector<32x128xf32>
        %146 = arith.cmpf ogt, %145, %23 : vector<32x128xf32>
        %cst_38 = arith.constant 1.000000e+00 : f32
        %cst_39 = arith.constant 0.000000e+00 : f32
        %147 = vector.broadcast %cst_38 : f32 to vector<32x128xf32>
        %148 = vector.broadcast %cst_39 : f32 to vector<32x128xf32>
        %149 = arith.select %146, %147, %148 : vector<32x128xi1>, vector<32x128xf32>
        %150 = arith.addf %134, %149 : vector<32x128xf32>
        %151 = vector.broadcast %c747796405_i32 : i32 to vector<32x128xi32>
        %152 = arith.muli %137, %151 : vector<32x128xi32>
        %153 = arith.addi %152, %47 : vector<32x128xi32>
        %c9_i32_40 = arith.constant 9 : i32
        %154 = vector.broadcast %c9_i32_40 : i32 to vector<32x128xi32>
        %155 = arith.shrui %153, %154 : vector<32x128xi32>
        %c1065353216_i32_41 = arith.constant 1065353216 : i32
        %156 = vector.broadcast %c1065353216_i32_41 : i32 to vector<32x128xi32>
        %157 = arith.ori %155, %156 : vector<32x128xi32>
        %158 = tpu.bitcast %157 : vector<32x128xi32> -> vector<32x128xf32>
        %cst_42 = arith.constant 1.000000e+00 : f32
        %159 = vector.broadcast %cst_42 : f32 to vector<32x128xf32>
        %160 = arith.subf %158, %159 : vector<32x128xf32>
        %161 = arith.mulf %145, %160 : vector<32x128xf32>
        %162 = arith.cmpf ogt, %161, %23 : vector<32x128xf32>
        %cst_43 = arith.constant 1.000000e+00 : f32
        %cst_44 = arith.constant 0.000000e+00 : f32
        %163 = vector.broadcast %cst_43 : f32 to vector<32x128xf32>
        %164 = vector.broadcast %cst_44 : f32 to vector<32x128xf32>
        %165 = arith.select %162, %163, %164 : vector<32x128xi1>, vector<32x128xf32>
        %166 = arith.addf %150, %165 : vector<32x128xf32>
        %167 = vector.broadcast %c747796405_i32 : i32 to vector<32x128xi32>
        %168 = arith.muli %153, %167 : vector<32x128xi32>
        %169 = arith.addi %168, %47 : vector<32x128xi32>
        %c9_i32_45 = arith.constant 9 : i32
        %170 = vector.broadcast %c9_i32_45 : i32 to vector<32x128xi32>
        %171 = arith.shrui %169, %170 : vector<32x128xi32>
        %c1065353216_i32_46 = arith.constant 1065353216 : i32
        %172 = vector.broadcast %c1065353216_i32_46 : i32 to vector<32x128xi32>
        %173 = arith.ori %171, %172 : vector<32x128xi32>
        %174 = tpu.bitcast %173 : vector<32x128xi32> -> vector<32x128xf32>
        %cst_47 = arith.constant 1.000000e+00 : f32
        %175 = vector.broadcast %cst_47 : f32 to vector<32x128xf32>
        %176 = arith.subf %174, %175 : vector<32x128xf32>
        %177 = arith.mulf %161, %176 : vector<32x128xf32>
        %178 = arith.cmpf ogt, %177, %23 : vector<32x128xf32>
        %cst_48 = arith.constant 1.000000e+00 : f32
        %cst_49 = arith.constant 0.000000e+00 : f32
        %179 = vector.broadcast %cst_48 : f32 to vector<32x128xf32>
        %180 = vector.broadcast %cst_49 : f32 to vector<32x128xf32>
        %181 = arith.select %178, %179, %180 : vector<32x128xi1>, vector<32x128xf32>
        %182 = arith.addf %166, %181 : vector<32x128xf32>
        %c1_i32_50 = arith.constant 1 : i32
        %183 = arith.addi %arg4, %c1_i32_50 : i32
        scf.yield %183, %169, %177, %182 : i32, vector<32x128xi32>, vector<32x128xf32>, vector<32x128xf32>
      }
      %cst_10 = arith.constant 5.000000e-01 : f32
      %51 = vector.broadcast %cst_10 : f32 to vector<32x128xf32>
      %52 = arith.mulf %50#3, %51 : vector<32x128xf32>
      %53 = arith.index_cast %12 : i32 to index
      %c0_11 = arith.constant 0 : index
      %54 = vector.load %arg3[%53, %c0_11] : memref<64x128xf32, #tpu.memory_space<vmem>>, vector<32x128xf32>
      tpu.vector_store %arg3[%53, %c0_11], %52 {strides = array<i32>} : memref<64x128xf32, #tpu.memory_space<vmem>>, vector<32x128xf32>,
    } else {
    }
    %c2_i32 = arith.constant 2 : i32
    return
  }
  func.func @transform_0(%arg0: i32, %arg1: memref<2xi32, #tpu.memory_space<smem>>) -> (i32, i32) {
    %c0_i32 = arith.constant 0 : i32
    %c0_i32_0 = arith.constant 0 : i32
    return %arg0, %c0_i32 : i32, i32
  }
  func.func @transform_1(%arg0: i32, %arg1: memref<2xi32, #tpu.memory_space<smem>>) -> (i32, i32) {
    %c0_i32 = arith.constant 0 : i32
    %c0_i32_0 = arith.constant 0 : i32
    return %arg0, %c0_i32 : i32, i32
  }
}

</mosaic_0001>

<llo_original>
// kernel: tpu_custom_call.1
$region0: #{tpu_custom_call.1}
  #allocation0 [shape = 'u32[]', space=smem, size = 0x4, offset = 0x4, fixed_abs, tag = 'smem constant byte address 0x4 - core index']
  #allocation1 [shape = 'u32[144,128]{1,0:T(1,128)}', space=vmem, size = 0x12000, scoped, tag = 'internal scratch']
  #allocation2 [shape = 's32[1]{0}', space=sflag, size = 0x4, scoped, tag = 'scoped memory for tpu_custom_call.1']
  #allocation3 [shape = 'u8[512]{0}', space=smem, size = 0x200, scoped, tag = 'prefetched SMEM operand 0']
  %s0 = inlined_call_operand.hbm [shape: s32[2], index: 0, kind: input, shape index: {}]
  %s1 = inlined_call_operand.hbm [shape: f32[64,128], index: 1, kind: input, shape index: {}]
  %s2 = inlined_call_operand.hbm [shape: f32[64,128], index: 2, kind: output, shape index: {}]
  %s3 = sld [smem:[#allocation0]]
  $region40: #{tpu_custom_call.1} parent=0
    _
  %s5 = ssub.s32 1, %s3
  %s6 = scalar_select 0, %s5, %s3
  %8 = dma.hbm_to_smem %s0, 16, [#allocation3], [#allocation2]
  %9 = dma.done [#allocation2], 16
  %10 = sfence
  $region1: #{tpu_custom_call.1} parent=0
    #allocation4 [shape = 'u8[32768]{0}', space=vmem, size = 0x8000, scoped, tag = 'input window, operand 1, single buffered']
    #allocation5 [shape = 's32[1]{0}', space=sflag, size = 0x4, scoped, tag = 'scoped memory for tpu_custom_call.1']
    #allocation6 [shape = 's32[1]{0}', space=sflag, size = 0x4, scoped, tag = 'scoped memory for tpu_custom_call.1']
    #allocation7 [shape = 'u8[32768]{0}', space=vmem, size = 0x8000, scoped, tag = 'output window, operand 0, single buffered']
    %11 = vsyncpa [#allocation5], 0
    %12 = vsyncpa [#allocation6], 0
    // Predicated region
    $region2: #{tpu_custom_call.1} parent=1 // pred_check
      _
    $region3: #{tpu_custom_call.1} parent=1 // pred_check_branch
      %14 = sbr.rel (0) target = $region5
    $region4: #{tpu_custom_call.1} parent=1 // pred_region
      %s16 = ssub.s32 1024, 1024
      %17 = vsyncadd [#allocation5], %s16
      %s18 = sshll.u32 [#allocation4], 4
      %s19 = int_to_ptr.vmem [resolvable:$true] %s18
      %24 = dma.hbm_to_vmem [thread:$0]  %s1, 1024, %s19, [#allocation5], 128, 128, 8
    $region5: #{tpu_custom_call.1} parent=1 // pred_fallthru
      _
    // Predicated region
    $region6: #{tpu_custom_call.1} parent=1 // pred_check
      _
    $region7: #{tpu_custom_call.1} parent=1 // pred_check_branch
      %26 = sbr.rel (0) target = $region9
    $region8: #{tpu_custom_call.1} parent=1 // pred_region
      %27 = dma.done [#allocation5], 1024
    $region9: #{tpu_custom_call.1} parent=1 // pred_fallthru
      _
    %s28 = sld [smem:[#allocation3]]
    %s29 = sld [smem:[#allocation3 + $0x1]]
    %s30 = smul.u32 0, 64
    %v31 = vlaneseq
    %v32 = vshrl.u32 %v31, 7
    %v33 = vadd.s32 %v32, 8
    %v34 = vadd.s32 %v32, 16
    %v35 = vadd.s32 %v32, 24
    %v36 = vlaneseq
    %v37 = vand.u32 %v36, 127
    %s38 = sadd.s32 %s30, 0
    %p39 = scmp.lt.s32.totalorder %s38, %s29
    // Predicated region
    $region10: #{tpu_custom_call.1} parent=1 // pred_check
      %p40 = pneg %p39
    $region11: #{tpu_custom_call.1} parent=1 // pred_check_branch
      %42 = sbr.rel (%p40) target = $region13
    $region12: #{tpu_custom_call.1} parent=1 // pred_region
      %v43 = vld [vmem:[#allocation4] sm:$0xff]
      %v44 = vld [vmem:[#allocation4 + $0x8] sm:$0xff]
      %v45 = vld [vmem:[#allocation4 + $0x10] sm:$0xff]
      %v46 = vld [vmem:[#allocation4 + $0x18] sm:$0xff]
      %v47 = vmul.f32 %v43, 2.0
      %v48 = vmul.f32 %v44, 2.0
      %v49 = vmul.f32 %v45, 2.0
      %v50 = vmul.f32 %v46, 2.0
      %v51 = vsub.f32 0.0, %v47
      %v52 = vsub.f32 0.0, %v48
      %v53 = vsub.f32 0.0, %v49
      %v54 = vsub.f32 0.0, %v50
      %v55 = vmul.f32 %v51, 1.442695
      %v56 = vpow.pop %v55
      %v57 = vmul.f32 %v52, 1.442695
      %v58 = vpow.pop %v57
      %v59 = vmul.f32 %v53, 1.442695
      %v60 = vpow.pop %v59
      %v61 = vmul.f32 %v54, 1.442695
      %v62 = vpow.pop %v61
      %v63 = vstv %s38
      %v64 = vadd.s32 %v63, %v32
      %v65 = vadd.s32 %v63, %v33
      %v66 = vadd.s32 %v63, %v34
      %v67 = vadd.s32 %v63, %v35
      %v68 = vmul.u32 %v64, 128
      %v69 = vmul.u32 %v65, 128
      %v70 = vmul.u32 %v66, 128
      %v71 = vmul.u32 %v67, 128
      %v72 = vadd.s32 %v68, %v37
      %v73 = vadd.s32 %v69, %v37
      %v74 = vadd.s32 %v70, %v37
      %v75 = vadd.s32 %v71, %v37
      %v76 = vstv %s28
      %v77 = vxor.u32 %v72, %v76
      %v78 = vxor.u32 %v73, %v76
      %v79 = vxor.u32 %v74, %v76
      %v80 = vxor.u32 %v75, %v76
      %v81 = vshrl.u32 %v77, 16
      %v82 = vshrl.u32 %v78, 16
      %v83 = vshrl.u32 %v79, 16
      %v84 = vshrl.u32 %v80, 16
      %v85 = vxor.u32 %v77, %v81
      %v86 = vxor.u32 %v78, %v82
      %v87 = vxor.u32 %v79, %v83
      %v88 = vxor.u32 %v80, %v84
      %v89 = vmul.u32 %v85, 2146121005
      %v90 = vmul.u32 %v86, 2146121005
      %v91 = vmul.u32 %v87, 2146121005
      %v92 = vmul.u32 %v88, 2146121005
      %v93 = vshrl.u32 %v89, 15
      %v94 = vshrl.u32 %v90, 15
      %v95 = vshrl.u32 %v91, 15
      %v96 = vshrl.u32 %v92, 15
      %v97 = vxor.u32 %v89, %v93
      %v98 = vxor.u32 %v90, %v94
      %v99 = vxor.u32 %v91, %v95
      %v100 = vxor.u32 %v92, %v96
      %v101 = vmul.u32 %v97, 2221713035
      %v102 = vmul.u32 %v98, 2221713035
      %v103 = vmul.u32 %v99, 2221713035
      %v104 = vmul.u32 %v100, 2221713035
      %v105 = vshrl.u32 %v101, 16
      %v106 = vshrl.u32 %v102, 16
      %v107 = vshrl.u32 %v103, 16
      %v108 = vshrl.u32 %v104, 16
      %v109 = vxor.u32 %v101, %v105
      %v110 = vxor.u32 %v102, %v106
      %v111 = vxor.u32 %v103, %v107
      %v112 = vxor.u32 %v104, %v108
      %v113 = vor.u32 %v109, 1
      %v114 = vor.u32 %v110, 1
      %v115 = vor.u32 %v111, 1
      %v116 = vor.u32 %v112, 1
      // While loop
      $region14: #{tpu_custom_call.1} parent=12 // loop_pre_header
        _
      $region15: #{tpu_custom_call.1} parent=12 // loop_header
        %s118 = sphi 0, %s473
        %v119 = vphi %v109, %v437
        %v120 = vphi %v110, %v438
        %v121 = vphi %v111, %v439
        %v122 = vphi %v112, %v440
        %v123 = vphi 1.0, %v457
        %v124 = vphi 1.0, %v458
        %v125 = vphi 1.0, %v459
        %v126 = vphi 1.0, %v460
        %v127 = vphi 0.0, %v469
        %v128 = vphi 0.0, %v470
        %v129 = vphi 0.0, %v471
        %v130 = vphi 0.0, %v472
        %v131 = vsub.f32 %v123, %v56
        %v132 = vsub.f32 %v124, %v58
        %v133 = vsub.f32 %v125, %v60
        %v134 = vsub.f32 %v126, %v62
        %v135 = vmax.f32 %v131, %v132
        %v136 = vmax.f32 %v133, %v134
        %v137 = vmax.f32 %v135, %v136
        %138 = vmax.xlane.f32.xlu0 %v137
        %v139 = vpop.xlane.xlu0 %138
        %v140 = vrot.slane %v139, 4
        %v141 = vmax.f32 %v139, %v140
        %v142 = vrot.slane %v141, 2
        %v143 = vmax.f32 %v141, %v142
        %v144 = vrot.slane %v143, 1
        %v145 = vmax.f32 %v143, %v144
        %s146 = vtos %v145
        %p147 = scmp.gt.f32.partialorder %s146, 0.0
        %p148 = scmp.lt.s32.totalorder %s118, 3
        %p149 = pnand %p148, %p147
        %p150 = pneg %p149
      $region16: #{tpu_custom_call.1} parent=12 // loop_header_branch
        %152 = sbr.rel (%p149) target = $region20
      $region17: #{tpu_custom_call.1} parent=12 // loop_body
        %v153 = vmul.u32 %v119, 747796405
        %v154 = vmul.u32 %v120, 747796405
        %v155 = vmul.u32 %v121, 747796405
        %v156 = vmul.u32 %v122, 747796405
        %v157 = vadd.s32 %v153, %v113
        %v158 = vadd.s32 %v154, %v114
        %v159 = vadd.s32 %v155, %v115
        %v160 = vadd.s32 %v156, %v116
        %v161 = vshrl.u32 %v157, 9
        %v162 = vshrl.u32 %v158, 9
        %v163 = vshrl.u32 %v159, 9
        %v164 = vshrl.u32 %v160, 9
        %v165 = vor.u32 %v161, 1065353216
        %v166 = vor.u32 %v162, 1065353216
        %v167 = vor.u32 %v163, 1065353216
        %v168 = vor.u32 %v164, 1065353216
        %v173 = vsub.f32 %v165, 1.0
        %v174 = vsub.f32 %v166, 1.0
        %v175 = vsub.f32 %v167, 1.0
        %v176 = vsub.f32 %v168, 1.0
        %v177 = vmul.f32 %v123, %v173
        %v178 = vmul.f32 %v124, %v174
        %v179 = vmul.f32 %v125, %v175
        %v180 = vmul.f32 %v126, %v176
        %vm181 = vcmp.gt.f32.partialorder %v177, %v56
        %vm182 = vcmp.gt.f32.partialorder %v178, %v58
        %vm183 = vcmp.gt.f32.partialorder %v179, %v60
        %vm184 = vcmp.gt.f32.partialorder %v180, %v62
        %v185 = vsel %vm181, 1.0, 0.0
        %v186 = vsel %vm182, 1.0, 0.0
        %v187 = vsel %vm183, 1.0, 0.0
        %v188 = vsel %vm184, 1.0, 0.0
        %v189 = vadd.f32 %v127, %v185
        %v190 = vadd.f32 %v128, %v186
        %v191 = vadd.f32 %v129, %v187
        %v192 = vadd.f32 %v130, %v188
        %v193 = vmul.u32 %v157, 747796405
        %v194 = vmul.u32 %v158, 747796405
        %v195 = vmul.u32 %v159, 747796405
        %v196 = vmul.u32 %v160, 747796405
        %v197 = vadd.s32 %v193, %v113
        %v198 = vadd.s32 %v194, %v114
        %v199 = vadd.s32 %v195, %v115
        %v200 = vadd.s32 %v196, %v116
        %v201 = vshrl.u32 %v197, 9
        %v202 = vshrl.u32 %v198, 9
        %v203 = vshrl.u32 %v199, 9
        %v204 = vshrl.u32 %v200, 9
        %v205 = vor.u32 %v201, 1065353216
        %v206 = vor.u32 %v202, 1065353216
        %v207 = vor.u32 %v203, 1065353216
        %v208 = vor.u32 %v204, 1065353216
        %v213 = vsub.f32 %v205, 1.0
        %v214 = vsub.f32 %v206, 1.0
        %v215 = vsub.f32 %v207, 1.0
        %v216 = vsub.f32 %v208, 1.0
        %v217 = vmul.f32 %v177, %v213
        %v218 = vmul.f32 %v178, %v214
        %v219 = vmul.f32 %v179, %v215
        %v220 = vmul.f32 %v180, %v216
        %vm221 = vcmp.gt.f32.partialorder %v217, %v56
        %vm222 = vcmp.gt.f32.partialorder %v218, %v58
        %vm223 = vcmp.gt.f32.partialorder %v219, %v60
        %vm224 = vcmp.gt.f32.partialorder %v220, %v62
        %v225 = vsel %vm221, 1.0, 0.0
        %v226 = vsel %vm222, 1.0, 0.0
        %v227 = vsel %vm223, 1.0, 0.0
        %v228 = vsel %vm224, 1.0, 0.0
        %v229 = vadd.f32 %v189, %v225
        %v230 = vadd.f32 %v190, %v226
        %v231 = vadd.f32 %v191, %v227
        %v232 = vadd.f32 %v192, %v228
        %v233 = vmul.u32 %v197, 747796405
        %v234 = vmul.u32 %v198, 747796405
        %v235 = vmul.u32 %v199, 747796405
        %v236 = vmul.u32 %v200, 747796405
        %v237 = vadd.s32 %v233, %v113
        %v238 = vadd.s32 %v234, %v114
        %v239 = vadd.s32 %v235, %v115
        %v240 = vadd.s32 %v236, %v116
        %v241 = vshrl.u32 %v237, 9
        %v242 = vshrl.u32 %v238, 9
        %v243 = vshrl.u32 %v239, 9
        %v244 = vshrl.u32 %v240, 9
        %v245 = vor.u32 %v241, 1065353216
        %v246 = vor.u32 %v242, 1065353216
        %v247 = vor.u32 %v243, 1065353216
        %v248 = vor.u32 %v244, 1065353216
        %v253 = vsub.f32 %v245, 1.0
        %v254 = vsub.f32 %v246, 1.0
        %v255 = vsub.f32 %v247, 1.0
        %v256 = vsub.f32 %v248, 1.0
        %v257 = vmul.f32 %v217, %v253
        %v258 = vmul.f32 %v218, %v254
        %v259 = vmul.f32 %v219, %v255
        %v260 = vmul.f32 %v220, %v256
        %vm261 = vcmp.gt.f32.partialorder %v257, %v56
        %vm262 = vcmp.gt.f32.partialorder %v258, %v58
        %vm263 = vcmp.gt.f32.partialorder %v259, %v60
        %vm264 = vcmp.gt.f32.partialorder %v260, %v62
        %v265 = vsel %vm261, 1.0, 0.0
        %v266 = vsel %vm262, 1.0, 0.0
        %v267 = vsel %vm263, 1.0, 0.0
        %v268 = vsel %vm264, 1.0, 0.0
        %v269 = vadd.f32 %v229, %v265
        %v270 = vadd.f32 %v230, %v266
        %v271 = vadd.f32 %v231, %v267
        %v272 = vadd.f32 %v232, %v268
        %v273 = vmul.u32 %v237, 747796405
        %v274 = vmul.u32 %v238, 747796405
        %v275 = vmul.u32 %v239, 747796405
        %v276 = vmul.u32 %v240, 747796405
        %v277 = vadd.s32 %v273, %v113
        %v278 = vadd.s32 %v274, %v114
        %v279 = vadd.s32 %v275, %v115
        %v280 = vadd.s32 %v276, %v116
        %v281 = vshrl.u32 %v277, 9
        %v282 = vshrl.u32 %v278, 9
        %v283 = vshrl.u32 %v279, 9
        %v284 = vshrl.u32 %v280, 9
        %v285 = vor.u32 %v281, 1065353216
        %v286 = vor.u32 %v282, 1065353216
        %v287 = vor.u32 %v283, 1065353216
        %v288 = vor.u32 %v284, 1065353216
        %v293 = vsub.f32 %v285, 1.0
        %v294 = vsub.f32 %v286, 1.0
        %v295 = vsub.f32 %v287, 1.0
        %v296 = vsub.f32 %v288, 1.0
        %v297 = vmul.f32 %v257, %v293
        %v298 = vmul.f32 %v258, %v294
        %v299 = vmul.f32 %v259, %v295
        %v300 = vmul.f32 %v260, %v296
        %vm301 = vcmp.gt.f32.partialorder %v297, %v56
        %vm302 = vcmp.gt.f32.partialorder %v298, %v58
        %vm303 = vcmp.gt.f32.partialorder %v299, %v60
        %vm304 = vcmp.gt.f32.partialorder %v300, %v62
        %v305 = vsel %vm301, 1.0, 0.0
        %v306 = vsel %vm302, 1.0, 0.0
        %v307 = vsel %vm303, 1.0, 0.0
        %v308 = vsel %vm304, 1.0, 0.0
        %v309 = vadd.f32 %v269, %v305
        %v310 = vadd.f32 %v270, %v306
        %v311 = vadd.f32 %v271, %v307
        %v312 = vadd.f32 %v272, %v308
        %v313 = vmul.u32 %v277, 747796405
        %v314 = vmul.u32 %v278, 747796405
        %v315 = vmul.u32 %v279, 747796405
        %v316 = vmul.u32 %v280, 747796405
        %v317 = vadd.s32 %v313, %v113
        %v318 = vadd.s32 %v314, %v114
        %v319 = vadd.s32 %v315, %v115
        %v320 = vadd.s32 %v316, %v116
        %v321 = vshrl.u32 %v317, 9
        %v322 = vshrl.u32 %v318, 9
        %v323 = vshrl.u32 %v319, 9
        %v324 = vshrl.u32 %v320, 9
        %v325 = vor.u32 %v321, 1065353216
        %v326 = vor.u32 %v322, 1065353216
        %v327 = vor.u32 %v323, 1065353216
        %v328 = vor.u32 %v324, 1065353216
        %v333 = vsub.f32 %v325, 1.0
        %v334 = vsub.f32 %v326, 1.0
        %v335 = vsub.f32 %v327, 1.0
        %v336 = vsub.f32 %v328, 1.0
        %v337 = vmul.f32 %v297, %v333
        %v338 = vmul.f32 %v298, %v334
        %v339 = vmul.f32 %v299, %v335
        %v340 = vmul.f32 %v300, %v336
        %vm341 = vcmp.gt.f32.partialorder %v337, %v56
        %vm342 = vcmp.gt.f32.partialorder %v338, %v58
        %vm343 = vcmp.gt.f32.partialorder %v339, %v60
        %vm344 = vcmp.gt.f32.partialorder %v340, %v62
        %v345 = vsel %vm341, 1.0, 0.0
        %v346 = vsel %vm342, 1.0, 0.0
        %v347 = vsel %vm343, 1.0, 0.0
        %v348 = vsel %vm344, 1.0, 0.0
        %v349 = vadd.f32 %v309, %v345
        %v350 = vadd.f32 %v310, %v346
        %v351 = vadd.f32 %v311, %v347
        %v352 = vadd.f32 %v312, %v348
        %v353 = vmul.u32 %v317, 747796405
        %v354 = vmul.u32 %v318, 747796405
        %v355 = vmul.u32 %v319, 747796405
        %v356 = vmul.u32 %v320, 747796405
        %v357 = vadd.s32 %v353, %v113
        %v358 = vadd.s32 %v354, %v114
        %v359 = vadd.s32 %v355, %v115
        %v360 = vadd.s32 %v356, %v116
        %v361 = vshrl.u32 %v357, 9
        %v362 = vshrl.u32 %v358, 9
        %v363 = vshrl.u32 %v359, 9
        %v364 = vshrl.u32 %v360, 9
        %v365 = vor.u32 %v361, 1065353216
        %v366 = vor.u32 %v362, 1065353216
        %v367 = vor.u32 %v363, 1065353216
        %v368 = vor.u32 %v364, 1065353216
        %v373 = vsub.f32 %v365, 1.0
        %v374 = vsub.f32 %v366, 1.0
        %v375 = vsub.f32 %v367, 1.0
        %v376 = vsub.f32 %v368, 1.0
        %v377 = vmul.f32 %v337, %v373
        %v378 = vmul.f32 %v338, %v374
        %v379 = vmul.f32 %v339, %v375
        %v380 = vmul.f32 %v340, %v376
        %vm381 = vcmp.gt.f32.partialorder %v377, %v56
        %vm382 = vcmp.gt.f32.partialorder %v378, %v58
        %vm383 = vcmp.gt.f32.partialorder %v379, %v60
        %vm384 = vcmp.gt.f32.partialorder %v380, %v62
        %v385 = vsel %vm381, 1.0, 0.0
        %v386 = vsel %vm382, 1.0, 0.0
        %v387 = vsel %vm383, 1.0, 0.0
        %v388 = vsel %vm384, 1.0, 0.0
        %v389 = vadd.f32 %v349, %v385
        %v390 = vadd.f32 %v350, %v386
        %v391 = vadd.f32 %v351, %v387
        %v392 = vadd.f32 %v352, %v388
        %v393 = vmul.u32 %v357, 747796405
        %v394 = vmul.u32 %v358, 747796405
        %v395 = vmul.u32 %v359, 747796405
        %v396 = vmul.u32 %v360, 747796405
        %v397 = vadd.s32 %v393, %v113
        %v398 = vadd.s32 %v394, %v114
        %v399 = vadd.s32 %v395, %v115
        %v400 = vadd.s32 %v396, %v116
        %v401 = vshrl.u32 %v397, 9
        %v402 = vshrl.u32 %v398, 9
        %v403 = vshrl.u32 %v399, 9
        %v404 = vshrl.u32 %v400, 9
        %v405 = vor.u32 %v401, 1065353216
        %v406 = vor.u32 %v402, 1065353216
        %v407 = vor.u32 %v403, 1065353216
        %v408 = vor.u32 %v404, 1065353216
        %v413 = vsub.f32 %v405, 1.0
        %v414 = vsub.f32 %v406, 1.0
        %v415 = vsub.f32 %v407, 1.0
        %v416 = vsub.f32 %v408, 1.0
        %v417 = vmul.f32 %v377, %v413
        %v418 = vmul.f32 %v378, %v414
        %v419 = vmul.f32 %v379, %v415
        %v420 = vmul.f32 %v380, %v416
        %vm421 = vcmp.gt.f32.partialorder %v417, %v56
        %vm422 = vcmp.gt.f32.partialorder %v418, %v58
        %vm423 = vcmp.gt.f32.partialorder %v419, %v60
        %vm424 = vcmp.gt.f32.partialorder %v420, %v62
        %v425 = vsel %vm421, 1.0, 0.0
        %v426 = vsel %vm422, 1.0, 0.0
        %v427 = vsel %vm423, 1.0, 0.0
        %v428 = vsel %vm424, 1.0, 0.0
        %v429 = vadd.f32 %v389, %v425
        %v430 = vadd.f32 %v390, %v426
        %v431 = vadd.f32 %v391, %v427
        %v432 = vadd.f32 %v392, %v428
        %v433 = vmul.u32 %v397, 747796405
        %v434 = vmul.u32 %v398, 747796405
        %v435 = vmul.u32 %v399, 747796405
        %v436 = vmul.u32 %v400, 747796405
        %v437 = vadd.s32 %v433, %v113
        %v438 = vadd.s32 %v434, %v114
        %v439 = vadd.s32 %v435, %v115
        %v440 = vadd.s32 %v436, %v116
        %v441 = vshrl.u32 %v437, 9
        %v442 = vshrl.u32 %v438, 9
        %v443 = vshrl.u32 %v439, 9
        %v444 = vshrl.u32 %v440, 9
        %v445 = vor.u32 %v441, 1065353216
        %v446 = vor.u32 %v442, 1065353216
        %v447 = vor.u32 %v443, 1065353216
        %v448 = vor.u32 %v444, 1065353216
        %v453 = vsub.f32 %v445, 1.0
        %v454 = vsub.f32 %v446, 1.0
        %v455 = vsub.f32 %v447, 1.0
        %v456 = vsub.f32 %v448, 1.0
        %v457 = vmul.f32 %v417, %v453
        %v458 = vmul.f32 %v418, %v454
        %v459 = vmul.f32 %v419, %v455
        %v460 = vmul.f32 %v420, %v456
        %vm461 = vcmp.gt.f32.partialorder %v457, %v56
        %vm462 = vcmp.gt.f32.partialorder %v458, %v58
        %vm463 = vcmp.gt.f32.partialorder %v459, %v60
        %vm464 = vcmp.gt.f32.partialorder %v460, %v62
        %v465 = vsel %vm461, 1.0, 0.0
        %v466 = vsel %vm462, 1.0, 0.0
        %v467 = vsel %vm463, 1.0, 0.0
        %v468 = vsel %vm464, 1.0, 0.0
        %v469 = vadd.f32 %v429, %v465
        %v470 = vadd.f32 %v430, %v466
        %v471 = vadd.f32 %v431, %v467
        %v472 = vadd.f32 %v432, %v468
        %s473 = sadd.s32 %s118, 1
      $region18: #{tpu_custom_call.1} parent=12 // loop_footer
        _
      $region19: #{tpu_custom_call.1} parent=12 // loop_footer_branch
        %117 = sbr.rel target = $region15
      $region20: #{tpu_custom_call.1} parent=12 // loop_exit
        _
      %v474 = vmul.f32 %v127, 0.5
      %v475 = vmul.f32 %v128, 0.5
      %v476 = vmul.f32 %v129, 0.5
      %v477 = vmul.f32 %v130, 0.5
      %478 = vst [vmem:[#allocation7] sm:$0xff] %v474
      %479 = vst [vmem:[#allocation7 + $0x8] sm:$0xff] %v475
      %480 = vst [vmem:[#allocation7 + $0x10] sm:$0xff] %v476
      %481 = vst [vmem:[#allocation7 + $0x18] sm:$0xff] %v477
    $region13: #{tpu_custom_call.1} parent=1 // pred_fallthru
      _
    %s482 = sadd.s32 %s30, 32
    %p483 = scmp.lt.s32.totalorder %s482, %s29
    // Predicated region
    $region21: #{tpu_custom_call.1} parent=1 // pred_check
      %p484 = pneg %p483
    $region22: #{tpu_custom_call.1} parent=1 // pred_check_branch
      %486 = sbr.rel (%p484) target = $region24
    $region23: #{tpu_custom_call.1} parent=1 // pred_region
      %s487 = scalar_lea.vmem [#allocation4], 32
      %v488 = vld [vmem:[%s487] sm:$0xff]
      %v489 = vld [vmem:[%s487 + $0x8] sm:$0xff]
      %v490 = vld [vmem:[%s487 + $0x10] sm:$0xff]
      %v491 = vld [vmem:[%s487 + $0x18] sm:$0xff]
      %v492 = vmul.f32 %v488, 2.0
      %v493 = vmul.f32 %v489, 2.0
      %v494 = vmul.f32 %v490, 2.0
      %v495 = vmul.f32 %v491, 2.0
      %v496 = vsub.f32 0.0, %v492
      %v497 = vsub.f32 0.0, %v493
      %v498 = vsub.f32 0.0, %v494
      %v499 = vsub.f32 0.0, %v495
      %v500 = vmul.f32 %v496, 1.442695
      %v501 = vpow.pop %v500
      %v502 = vmul.f32 %v497, 1.442695
      %v503 = vpow.pop %v502
      %v504 = vmul.f32 %v498, 1.442695
      %v505 = vpow.pop %v504
      %v506 = vmul.f32 %v499, 1.442695
      %v507 = vpow.pop %v506
      %v508 = vstv %s482
      %v509 = vadd.s32 %v508, %v32
      %v510 = vadd.s32 %v508, %v33
      %v511 = vadd.s32 %v508, %v34
      %v512 = vadd.s32 %v508, %v35
      %v513 = vmul.u32 %v509, 128
      %v514 = vmul.u32 %v510, 128
      %v515 = vmul.u32 %v511, 128
      %v516 = vmul.u32 %v512, 128
      %v517 = vadd.s32 %v513, %v37
      %v518 = vadd.s32 %v514, %v37
      %v519 = vadd.s32 %v515, %v37
      %v520 = vadd.s32 %v516, %v37
      %v521 = vstv %s28
      %v522 = vxor.u32 %v517, %v521
      %v523 = vxor.u32 %v518, %v521
      %v524 = vxor.u32 %v519, %v521
      %v525 = vxor.u32 %v520, %v521
      %v526 = vshrl.u32 %v522, 16
      %v527 = vshrl.u32 %v523, 16
      %v528 = vshrl.u32 %v524, 16
      %v529 = vshrl.u32 %v525, 16
      %v530 = vxor.u32 %v522, %v526
      %v531 = vxor.u32 %v523, %v527
      %v532 = vxor.u32 %v524, %v528
      %v533 = vxor.u32 %v525, %v529
      %v534 = vmul.u32 %v530, 2146121005
      %v535 = vmul.u32 %v531, 2146121005
      %v536 = vmul.u32 %v532, 2146121005
      %v537 = vmul.u32 %v533, 2146121005
      %v538 = vshrl.u32 %v534, 15
      %v539 = vshrl.u32 %v535, 15
      %v540 = vshrl.u32 %v536, 15
      %v541 = vshrl.u32 %v537, 15
      %v542 = vxor.u32 %v534, %v538
      %v543 = vxor.u32 %v535, %v539
      %v544 = vxor.u32 %v536, %v540
      %v545 = vxor.u32 %v537, %v541
      %v546 = vmul.u32 %v542, 2221713035
      %v547 = vmul.u32 %v543, 2221713035
      %v548 = vmul.u32 %v544, 2221713035
      %v549 = vmul.u32 %v545, 2221713035
      %v550 = vshrl.u32 %v546, 16
      %v551 = vshrl.u32 %v547, 16
      %v552 = vshrl.u32 %v548, 16
      %v553 = vshrl.u32 %v549, 16
      %v554 = vxor.u32 %v546, %v550
      %v555 = vxor.u32 %v547, %v551
      %v556 = vxor.u32 %v548, %v552
      %v557 = vxor.u32 %v549, %v553
      %v558 = vor.u32 %v554, 1
      %v559 = vor.u32 %v555, 1
      %v560 = vor.u32 %v556, 1
      %v561 = vor.u32 %v557, 1
      // While loop
      $region25: #{tpu_custom_call.1} parent=23 // loop_pre_header
        _
      $region26: #{tpu_custom_call.1} parent=23 // loop_header
        %s563 = sphi 0, %s918
        %v564 = vphi %v554, %v882
        %v565 = vphi %v555, %v883
        %v566 = vphi %v556, %v884
        %v567 = vphi %v557, %v885
        %v568 = vphi 1.0, %v902
        %v569 = vphi 1.0, %v903
        %v570 = vphi 1.0, %v904
        %v571 = vphi 1.0, %v905
        %v572 = vphi 0.0, %v914
        %v573 = vphi 0.0, %v915
        %v574 = vphi 0.0, %v916
        %v575 = vphi 0.0, %v917
        %v576 = vsub.f32 %v568, %v501
        %v577 = vsub.f32 %v569, %v503
        %v578 = vsub.f32 %v570, %v505
        %v579 = vsub.f32 %v571, %v507
        %v580 = vmax.f32 %v576, %v577
        %v581 = vmax.f32 %v578, %v579
        %v582 = vmax.f32 %v580, %v581
        %583 = vmax.xlane.f32.xlu0 %v582
        %v584 = vpop.xlane.xlu0 %583
        %v585 = vrot.slane %v584, 4
        %v586 = vmax.f32 %v584, %v585
        %v587 = vrot.slane %v586, 2
        %v588 = vmax.f32 %v586, %v587
        %v589 = vrot.slane %v588, 1
        %v590 = vmax.f32 %v588, %v589
        %s591 = vtos %v590
        %p592 = scmp.gt.f32.partialorder %s591, 0.0
        %p593 = scmp.lt.s32.totalorder %s563, 3
        %p594 = pnand %p593, %p592
        %p595 = pneg %p594
      $region27: #{tpu_custom_call.1} parent=23 // loop_header_branch
        %597 = sbr.rel (%p594) target = $region31
      $region28: #{tpu_custom_call.1} parent=23 // loop_body
        %v598 = vmul.u32 %v564, 747796405
        %v599 = vmul.u32 %v565, 747796405
        %v600 = vmul.u32 %v566, 747796405
        %v601 = vmul.u32 %v567, 747796405
        %v602 = vadd.s32 %v598, %v558
        %v603 = vadd.s32 %v599, %v559
        %v604 = vadd.s32 %v600, %v560
        %v605 = vadd.s32 %v601, %v561
        %v606 = vshrl.u32 %v602, 9
        %v607 = vshrl.u32 %v603, 9
        %v608 = vshrl.u32 %v604, 9
        %v609 = vshrl.u32 %v605, 9
        %v610 = vor.u32 %v606, 1065353216
        %v611 = vor.u32 %v607, 1065353216
        %v612 = vor.u32 %v608, 1065353216
        %v613 = vor.u32 %v609, 1065353216
        %v618 = vsub.f32 %v610, 1.0
        %v619 = vsub.f32 %v611, 1.0
        %v620 = vsub.f32 %v612, 1.0
        %v621 = vsub.f32 %v613, 1.0
        %v622 = vmul.f32 %v568, %v618
        %v623 = vmul.f32 %v569, %v619
        %v624 = vmul.f32 %v570, %v620
        %v625 = vmul.f32 %v571, %v621
        %vm626 = vcmp.gt.f32.partialorder %v622, %v501
        %vm627 = vcmp.gt.f32.partialorder %v623, %v503
        %vm628 = vcmp.gt.f32.partialorder %v624, %v505
        %vm629 = vcmp.gt.f32.partialorder %v625, %v507
        %v630 = vsel %vm626, 1.0, 0.0
        %v631 = vsel %vm627, 1.0, 0.0
        %v632 = vsel %vm628, 1.0, 0.0
        %v633 = vsel %vm629, 1.0, 0.0
        %v634 = vadd.f32 %v572, %v630
        %v635 = vadd.f32 %v573, %v631
        %v636 = vadd.f32 %v574, %v632
        %v637 = vadd.f32 %v575, %v633
        %v638 = vmul.u32 %v602, 747796405
        %v639 = vmul.u32 %v603, 747796405
        %v640 = vmul.u32 %v604, 747796405
        %v641 = vmul.u32 %v605, 747796405
        %v642 = vadd.s32 %v638, %v558
        %v643 = vadd.s32 %v639, %v559
        %v644 = vadd.s32 %v640, %v560
        %v645 = vadd.s32 %v641, %v561
        %v646 = vshrl.u32 %v642, 9
        %v647 = vshrl.u32 %v643, 9
        %v648 = vshrl.u32 %v644, 9
        %v649 = vshrl.u32 %v645, 9
        %v650 = vor.u32 %v646, 1065353216
        %v651 = vor.u32 %v647, 1065353216
        %v652 = vor.u32 %v648, 1065353216
        %v653 = vor.u32 %v649, 1065353216
        %v658 = vsub.f32 %v650, 1.0
        %v659 = vsub.f32 %v651, 1.0
        %v660 = vsub.f32 %v652, 1.0
        %v661 = vsub.f32 %v653, 1.0
        %v662 = vmul.f32 %v622, %v658
        %v663 = vmul.f32 %v623, %v659
        %v664 = vmul.f32 %v624, %v660
        %v665 = vmul.f32 %v625, %v661
        %vm666 = vcmp.gt.f32.partialorder %v662, %v501
        %vm667 = vcmp.gt.f32.partialorder %v663, %v503
        %vm668 = vcmp.gt.f32.partialorder %v664, %v505
        %vm669 = vcmp.gt.f32.partialorder %v665, %v507
        %v670 = vsel %vm666, 1.0, 0.0
        %v671 = vsel %vm667, 1.0, 0.0
        %v672 = vsel %vm668, 1.0, 0.0
        %v673 = vsel %vm669, 1.0, 0.0
        %v674 = vadd.f32 %v634, %v670
        %v675 = vadd.f32 %v635, %v671
        %v676 = vadd.f32 %v636, %v672
        %v677 = vadd.f32 %v637, %v673
        %v678 = vmul.u32 %v642, 747796405
        %v679 = vmul.u32 %v643, 747796405
        %v680 = vmul.u32 %v644, 747796405
        %v681 = vmul.u32 %v645, 747796405
        %v682 = vadd.s32 %v678, %v558
        %v683 = vadd.s32 %v679, %v559
        %v684 = vadd.s32 %v680, %v560
        %v685 = vadd.s32 %v681, %v561
        %v686 = vshrl.u32 %v682, 9
        %v687 = vshrl.u32 %v683, 9
        %v688 = vshrl.u32 %v684, 9
        %v689 = vshrl.u32 %v685, 9
        %v690 = vor.u32 %v686, 1065353216
        %v691 = vor.u32 %v687, 1065353216
        %v692 = vor.u32 %v688, 1065353216
        %v693 = vor.u32 %v689, 1065353216
        %v698 = vsub.f32 %v690, 1.0
        %v699 = vsub.f32 %v691, 1.0
        %v700 = vsub.f32 %v692, 1.0
        %v701 = vsub.f32 %v693, 1.0
        %v702 = vmul.f32 %v662, %v698
        %v703 = vmul.f32 %v663, %v699
        %v704 = vmul.f32 %v664, %v700
        %v705 = vmul.f32 %v665, %v701
        %vm706 = vcmp.gt.f32.partialorder %v702, %v501
        %vm707 = vcmp.gt.f32.partialorder %v703, %v503
        %vm708 = vcmp.gt.f32.partialorder %v704, %v505
        %vm709 = vcmp.gt.f32.partialorder %v705, %v507
        %v710 = vsel %vm706, 1.0, 0.0
        %v711 = vsel %vm707, 1.0, 0.0
        %v712 = vsel %vm708, 1.0, 0.0
        %v713 = vsel %vm709, 1.0, 0.0
        %v714 = vadd.f32 %v674, %v710
        %v715 = vadd.f32 %v675, %v711
        %v716 = vadd.f32 %v676, %v712
        %v717 = vadd.f32 %v677, %v713
        %v718 = vmul.u32 %v682, 747796405
        %v719 = vmul.u32 %v683, 747796405
        %v720 = vmul.u32 %v684, 747796405
        %v721 = vmul.u32 %v685, 747796405
        %v722 = vadd.s32 %v718, %v558
        %v723 = vadd.s32 %v719, %v559
        %v724 = vadd.s32 %v720, %v560
        %v725 = vadd.s32 %v721, %v561
        %v726 = vshrl.u32 %v722, 9
        %v727 = vshrl.u32 %v723, 9
        %v728 = vshrl.u32 %v724, 9
        %v729 = vshrl.u32 %v725, 9
        %v730 = vor.u32 %v726, 1065353216
        %v731 = vor.u32 %v727, 1065353216
        %v732 = vor.u32 %v728, 1065353216
        %v733 = vor.u32 %v729, 1065353216
        %v738 = vsub.f32 %v730, 1.0
        %v739 = vsub.f32 %v731, 1.0
        %v740 = vsub.f32 %v732, 1.0
        %v741 = vsub.f32 %v733, 1.0
        %v742 = vmul.f32 %v702, %v738
        %v743 = vmul.f32 %v703, %v739
        %v744 = vmul.f32 %v704, %v740
        %v745 = vmul.f32 %v705, %v741
        %vm746 = vcmp.gt.f32.partialorder %v742, %v501
        %vm747 = vcmp.gt.f32.partialorder %v743, %v503
        %vm748 = vcmp.gt.f32.partialorder %v744, %v505
        %vm749 = vcmp.gt.f32.partialorder %v745, %v507
        %v750 = vsel %vm746, 1.0, 0.0
        %v751 = vsel %vm747, 1.0, 0.0
        %v752 = vsel %vm748, 1.0, 0.0
        %v753 = vsel %vm749, 1.0, 0.0
        %v754 = vadd.f32 %v714, %v750
        %v755 = vadd.f32 %v715, %v751
        %v756 = vadd.f32 %v716, %v752
        %v757 = vadd.f32 %v717, %v753
        %v758 = vmul.u32 %v722, 747796405
        %v759 = vmul.u32 %v723, 747796405
        %v760 = vmul.u32 %v724, 747796405
        %v761 = vmul.u32 %v725, 747796405
        %v762 = vadd.s32 %v758, %v558
        %v763 = vadd.s32 %v759, %v559
        %v764 = vadd.s32 %v760, %v560
        %v765 = vadd.s32 %v761, %v561
        %v766 = vshrl.u32 %v762, 9
        %v767 = vshrl.u32 %v763, 9
        %v768 = vshrl.u32 %v764, 9
        %v769 = vshrl.u32 %v765, 9
        %v770 = vor.u32 %v766, 1065353216
        %v771 = vor.u32 %v767, 1065353216
        %v772 = vor.u32 %v768, 1065353216
        %v773 = vor.u32 %v769, 1065353216
        %v778 = vsub.f32 %v770, 1.0
        %v779 = vsub.f32 %v771, 1.0
        %v780 = vsub.f32 %v772, 1.0
        %v781 = vsub.f32 %v773, 1.0
        %v782 = vmul.f32 %v742, %v778
        %v783 = vmul.f32 %v743, %v779
        %v784 = vmul.f32 %v744, %v780
        %v785 = vmul.f32 %v745, %v781
        %vm786 = vcmp.gt.f32.partialorder %v782, %v501
        %vm787 = vcmp.gt.f32.partialorder %v783, %v503
        %vm788 = vcmp.gt.f32.partialorder %v784, %v505
        %vm789 = vcmp.gt.f32.partialorder %v785, %v507
        %v790 = vsel %vm786, 1.0, 0.0
        %v791 = vsel %vm787, 1.0, 0.0
        %v792 = vsel %vm788, 1.0, 0.0
        %v793 = vsel %vm789, 1.0, 0.0
        %v794 = vadd.f32 %v754, %v790
        %v795 = vadd.f32 %v755, %v791
        %v796 = vadd.f32 %v756, %v792
        %v797 = vadd.f32 %v757, %v793
        %v798 = vmul.u32 %v762, 747796405
        %v799 = vmul.u32 %v763, 747796405
        %v800 = vmul.u32 %v764, 747796405
        %v801 = vmul.u32 %v765, 747796405
        %v802 = vadd.s32 %v798, %v558
        %v803 = vadd.s32 %v799, %v559
        %v804 = vadd.s32 %v800, %v560
        %v805 = vadd.s32 %v801, %v561
        %v806 = vshrl.u32 %v802, 9
        %v807 = vshrl.u32 %v803, 9
        %v808 = vshrl.u32 %v804, 9
        %v809 = vshrl.u32 %v805, 9
        %v810 = vor.u32 %v806, 1065353216
        %v811 = vor.u32 %v807, 1065353216
        %v812 = vor.u32 %v808, 1065353216
        %v813 = vor.u32 %v809, 1065353216
        %v818 = vsub.f32 %v810, 1.0
        %v819 = vsub.f32 %v811, 1.0
        %v820 = vsub.f32 %v812, 1.0
        %v821 = vsub.f32 %v813, 1.0
        %v822 = vmul.f32 %v782, %v818
        %v823 = vmul.f32 %v783, %v819
        %v824 = vmul.f32 %v784, %v820
        %v825 = vmul.f32 %v785, %v821
        %vm826 = vcmp.gt.f32.partialorder %v822, %v501
        %vm827 = vcmp.gt.f32.partialorder %v823, %v503
        %vm828 = vcmp.gt.f32.partialorder %v824, %v505
        %vm829 = vcmp.gt.f32.partialorder %v825, %v507
        %v830 = vsel %vm826, 1.0, 0.0
        %v831 = vsel %vm827, 1.0, 0.0
        %v832 = vsel %vm828, 1.0, 0.0
        %v833 = vsel %vm829, 1.0, 0.0
        %v834 = vadd.f32 %v794, %v830
        %v835 = vadd.f32 %v795, %v831
        %v836 = vadd.f32 %v796, %v832
        %v837 = vadd.f32 %v797, %v833
        %v838 = vmul.u32 %v802, 747796405
        %v839 = vmul.u32 %v803, 747796405
        %v840 = vmul.u32 %v804, 747796405
        %v841 = vmul.u32 %v805, 747796405
        %v842 = vadd.s32 %v838, %v558
        %v843 = vadd.s32 %v839, %v559
        %v844 = vadd.s32 %v840, %v560
        %v845 = vadd.s32 %v841, %v561
        %v846 = vshrl.u32 %v842, 9
        %v847 = vshrl.u32 %v843, 9
        %v848 = vshrl.u32 %v844, 9
        %v849 = vshrl.u32 %v845, 9
        %v850 = vor.u32 %v846, 1065353216
        %v851 = vor.u32 %v847, 1065353216
        %v852 = vor.u32 %v848, 1065353216
        %v853 = vor.u32 %v849, 1065353216
        %v858 = vsub.f32 %v850, 1.0
        %v859 = vsub.f32 %v851, 1.0
        %v860 = vsub.f32 %v852, 1.0
        %v861 = vsub.f32 %v853, 1.0
        %v862 = vmul.f32 %v822, %v858
        %v863 = vmul.f32 %v823, %v859
        %v864 = vmul.f32 %v824, %v860
        %v865 = vmul.f32 %v825, %v861
        %vm866 = vcmp.gt.f32.partialorder %v862, %v501
        %vm867 = vcmp.gt.f32.partialorder %v863, %v503
        %vm868 = vcmp.gt.f32.partialorder %v864, %v505
        %vm869 = vcmp.gt.f32.partialorder %v865, %v507
        %v870 = vsel %vm866, 1.0, 0.0
        %v871 = vsel %vm867, 1.0, 0.0
        %v872 = vsel %vm868, 1.0, 0.0
        %v873 = vsel %vm869, 1.0, 0.0
        %v874 = vadd.f32 %v834, %v870
        %v875 = vadd.f32 %v835, %v871
        %v876 = vadd.f32 %v836, %v872
        %v877 = vadd.f32 %v837, %v873
        %v878 = vmul.u32 %v842, 747796405
        %v879 = vmul.u32 %v843, 747796405
        %v880 = vmul.u32 %v844, 747796405
        %v881 = vmul.u32 %v845, 747796405
        %v882 = vadd.s32 %v878, %v558
        %v883 = vadd.s32 %v879, %v559
        %v884 = vadd.s32 %v880, %v560
        %v885 = vadd.s32 %v881, %v561
        %v886 = vshrl.u32 %v882, 9
        %v887 = vshrl.u32 %v883, 9
        %v888 = vshrl.u32 %v884, 9
        %v889 = vshrl.u32 %v885, 9
        %v890 = vor.u32 %v886, 1065353216
        %v891 = vor.u32 %v887, 1065353216
        %v892 = vor.u32 %v888, 1065353216
        %v893 = vor.u32 %v889, 1065353216
        %v898 = vsub.f32 %v890, 1.0
        %v899 = vsub.f32 %v891, 1.0
        %v900 = vsub.f32 %v892, 1.0
        %v901 = vsub.f32 %v893, 1.0
        %v902 = vmul.f32 %v862, %v898
        %v903 = vmul.f32 %v863, %v899
        %v904 = vmul.f32 %v864, %v900
        %v905 = vmul.f32 %v865, %v901
        %vm906 = vcmp.gt.f32.partialorder %v902, %v501
        %vm907 = vcmp.gt.f32.partialorder %v903, %v503
        %vm908 = vcmp.gt.f32.partialorder %v904, %v505
        %vm909 = vcmp.gt.f32.partialorder %v905, %v507
        %v910 = vsel %vm906, 1.0, 0.0
        %v911 = vsel %vm907, 1.0, 0.0
        %v912 = vsel %vm908, 1.0, 0.0
        %v913 = vsel %vm909, 1.0, 0.0
        %v914 = vadd.f32 %v874, %v910
        %v915 = vadd.f32 %v875, %v911
        %v916 = vadd.f32 %v876, %v912
        %v917 = vadd.f32 %v877, %v913
        %s918 = sadd.s32 %s563, 1
      $region29: #{tpu_custom_call.1} parent=23 // loop_footer
        _
      $region30: #{tpu_custom_call.1} parent=23 // loop_footer_branch
        %562 = sbr.rel target = $region26
      $region31: #{tpu_custom_call.1} parent=23 // loop_exit
        _
      %v919 = vmul.f32 %v572, 0.5
      %v920 = vmul.f32 %v573, 0.5
      %v921 = vmul.f32 %v574, 0.5
      %v922 = vmul.f32 %v575, 0.5
      %s923 = scalar_lea.vmem [#allocation7], 32
      %924 = vst [vmem:[%s923] sm:$0xff] %v919
      %925 = vst [vmem:[%s923 + $0x8] sm:$0xff] %v920
      %926 = vst [vmem:[%s923 + $0x10] sm:$0xff] %v921
      %927 = vst [vmem:[%s923 + $0x18] sm:$0xff] %v922
    $region24: #{tpu_custom_call.1} parent=1 // pred_fallthru
      _
    // Predicated region
    $region32: #{tpu_custom_call.1} parent=1 // pred_check
      _
    $region33: #{tpu_custom_call.1} parent=1 // pred_check_branch
      %929 = sbr.rel (0) target = $region35
    $region34: #{tpu_custom_call.1} parent=1 // pred_region
      %s931 = ssub.s32 1024, 1024
      %932 = vsyncadd [#allocation6], %s931
      %s933 = sshll.u32 [#allocation7], 4
      %s934 = int_to_ptr.vmem [resolvable:$true] %s933
      %939 = dma.vmem_to_hbm [thread:$0]  %s934, 1024, %s2, [#allocation6], 128, 128, 8
    $region35: #{tpu_custom_call.1} parent=1 // pred_fallthru
      _
    // Predicated region
    $region36: #{tpu_custom_call.1} parent=1 // pred_check
      _
    $region37: #{tpu_custom_call.1} parent=1 // pred_check_branch
      %941 = sbr.rel (0) target = $region39
    $region38: #{tpu_custom_call.1} parent=1 // pred_region
      %942 = dma.done [#allocation6], 1024
    $region39: #{tpu_custom_call.1} parent=1 // pred_fallthru
      _
    %943 = vsyncpa [#allocation5], 1
    %944 = vsyncpa [#allocation6], 1

</llo_original>
